<compile_context>
chip_gen: v6e
topology: v6e:2x2x1
jax: 0.10.0
libtpu: 0.0.40
codegen_flags: <defaults>
</compile_context>

<pallas_src>
import functools

import numpy as np
import jax
import jax.numpy as jnp
from jax import lax
from jax.experimental import pallas as pl
from jax.experimental.pallas import tpu as pltpu

OUT_H = 299
OUT_W = 299


def _round_up(x: int, m: int) -> int:
    return (x + m - 1) // m * m


@functools.lru_cache(maxsize=None)
def _bilinear_weight_matrix(in_size: int, out_size: int) -> np.ndarray:
    """Dense (out_size, in_size) interpolation matrix, PyTorch align_corners=False,
    antialias=False (the F.interpolate defaults used by the module)."""
    scale = in_size / out_size
    dst = np.arange(out_size, dtype=np.float64)
    src = (dst + 0.5) * scale - 0.5
    src = np.maximum(src, 0.0)                      # PyTorch clamps negative source idx
    idx0 = np.minimum(np.floor(src).astype(np.int64), in_size - 1)
    idx1 = np.minimum(idx0 + 1, in_size - 1)
    lam1 = src - idx0
    lam0 = 1.0 - lam1
    w = np.zeros((out_size, in_size), dtype=np.float64)
    rows = np.arange(out_size)
    np.add.at(w, (rows, idx0), lam0)
    np.add.at(w, (rows, idx1), lam1)
    return w.astype(np.float32)


def _vmem_capacity_bytes() -> int:
    """Physical VMEM of the current generation (128 MiB v5e/v6e, 64 MiB v7x)."""
    try:
        return int(pltpu.get_tpu_info().vmem_capacity_bytes)
    except Exception:
        return 128 * 1024 * 1024


def _pick_block_b(nc, h, w, in_itemsize, out_itemsize, budget):
    """Images per grid step -> (block_b, ragged, footprint_bytes).

    Uses real (8,128)-tiled VMEM sizes for the double-buffered in/out blocks,
    counts the single-image f32 temporaries once (the fori_loop keeps only one
    image's intermediates live), and prefers a block_b that (a) divides NC
    exactly (no padding / ragged last block) and (b) yields an even number of
    grid blocks (balanced megacore split on v7x)."""
    h_s, w_l = _round_up(h, 8), _round_up(w, 128)
    oh_s, ow_l = _round_up(OUT_H, 8), _round_up(OUT_W, 128)

    # Double-buffered input + output block, per image (tiled sizes).
    per_img = 2 * (h_s * w_l * in_itemsize + oh_s * ow_l * out_itemsize)
    # Per-iteration temporaries (one image live at a time inside the fori_loop).
    tmp_f32 = max(h_s * ow_l, oh_s * w_l) * 4
    precast_f32 = oh_s * ow_l * 4
    # Interpolation matrices (double-buffered by default pipelining).
    weights = 2 * (_round_up(w, 8) * ow_l + oh_s * _round_up(h, 128)) * 4
    fixed = tmp_f32 + precast_f32 + weights
    margin = 2 * 1024 * 1024                        # compiler-internal scratch

    bmax = max(1, (budget - fixed - margin) // per_img)
    bmax = int(min(bmax, nc))
    if nc >= 2:
        bmax = min(bmax, pl.cdiv(nc, 2))            # keep >= 2 grid blocks
    bmax = max(1, bmax)

    divisors = [d for d in range(1, bmax + 1) if nc % d == 0]
    best = divisors[-1]
    even = [d for d in divisors if (nc // d) % 2 == 0]
    if even and 2 * even[-1] >= best:
        best = even[-1]                             # even block count, nearly as large

    if best >= 8 or 2 * best >= bmax:
        block_b, ragged = best, False
    else:
        # No usable divisor (e.g. large prime NC): ragged cdiv grid; Pallas
        # clips the partial last block's read/writeback — no host pad/slice.
        block_b, ragged = bmax, True

    footprint = fixed + block_b * per_img
    return block_b, ragged, footprint


def _make_kernel(block_b, compute_dtype, horizontal_first):
    """Kernel over a (block_b, H, W) input block -> (block_b, 299, 299) output."""

    def kernel(x_ref, wwt_ref, wh_ref, o_ref):
        # x_ref : (B, H, W)   wwt_ref : (W, 299)   wh_ref : (299, H)
        # o_ref : (B, 299, 299)
        wwt = wwt_ref[...]
        wh = wh_ref[...]

        def body(b, carry):
            xb = x_ref[b]                                                  # (H, W)
            if xb.dtype != compute_dtype:
                xb = xb.astype(compute_dtype)
            if horizontal_first:
                t = jnp.dot(xb, wwt, preferred_element_type=jnp.float32)   # (H, 299)
                t = t.astype(compute_dtype)
                out = jnp.dot(wh, t, preferred_element_type=jnp.float32)   # (299, 299)
            else:
                t = jnp.dot(wh, xb, preferred_element_type=jnp.float32)    # (299, W)
                t = t.astype(compute_dtype)
                out = jnp.dot(t, wwt, preferred_element_type=jnp.float32)  # (299, 299)
            o_ref[b] = out.astype(o_ref.dtype)
            return carry

        lax.fori_loop(0, block_b, body, 0)

    return kernel


def interpolate_to_inception(x: jax.Array) -> jax.Array:
    """x: (N, C, H, W) -> (N, C, 299, 299), bilinear, align_corners=False."""
    n, c, h, w = x.shape
    nc = n * c
    out_dtype = x.dtype
    in_itemsize = jnp.dtype(x.dtype).itemsize
    out_itemsize = jnp.dtype(out_dtype).itemsize

    # bf16 keeps the native bf16 MXU datapath; everything else computes in f32.
    compute_dtype = jnp.bfloat16 if x.dtype == jnp.bfloat16 else jnp.float32
    w_itemsize = jnp.dtype(compute_dtype).itemsize
    # Pass order: smaller of (H, W) becomes the contraction of the big matmul.
    horizontal_first = h <= w

    vmem_cap = _vmem_capacity_bytes()
    budget = min(int(vmem_cap * 0.35), 36 * 1024 * 1024)  # ~36 MiB v5e/v6e, ~22 MiB v7x
    block_b, _ragged, footprint = _pick_block_b(
        nc, h, w, in_itemsize, out_itemsize, budget
    )
    num_blocks = pl.cdiv(nc, block_b)

    wh = jnp.asarray(_bilinear_weight_matrix(h, OUT_H), dtype=compute_dtype)  # (299, H)
    wwt = jnp.asarray(
        np.ascontiguousarray(_bilinear_weight_matrix(w, OUT_W).T), dtype=compute_dtype
    )                                                                          # (W, 299)

    x_flat = x.reshape(nc, h, w)
    kernel = _make_kernel(block_b, compute_dtype, horizontal_first)

    if horizontal_first:
        flops = 2 * nc * (h * w * OUT_W + OUT_H * h * OUT_W)
    else:
        flops = 2 * nc * (OUT_H * h * w + OUT_H * w * OUT_W)
    bytes_accessed = (
        nc * (h * w * in_itemsize + OUT_H * OUT_W * out_itemsize)
        + (w * OUT_W + OUT_H * h) * w_itemsize
    )
    cost = pl.CostEstimate(
        flops=int(flops), transcendentals=0, bytes_accessed=int(bytes_accessed)
    )

    vmem_limit = int(
        min(vmem_cap * 3 // 4, max(32 * 1024 * 1024, 2 * footprint + (8 << 20)))
    )

    out_flat = pl.pallas_call(
        kernel,
        out_shape=jax.ShapeDtypeStruct((nc, OUT_H, OUT_W), out_dtype),
        grid_spec=pltpu.PrefetchScalarGridSpec(
            num_scalar_prefetch=0,
            grid=(num_blocks,),
            in_specs=[
                pl.BlockSpec((block_b, h, w), lambda i: (i, 0, 0)),
                pl.BlockSpec((w, OUT_W), lambda i: (0, 0)),   # Ww^T, constant index -> fetched once
                pl.BlockSpec((OUT_H, h), lambda i: (0, 0)),   # Wh,   constant index -> fetched once
            ],
            out_specs=pl.BlockSpec((block_b, OUT_H, OUT_W), lambda i: (i, 0, 0)),
        ),
        compiler_params=pltpu.CompilerParams(
            dimension_semantics=("parallel",),
            vmem_limit_bytes=vmem_limit,
        ),
        cost_estimate=cost,
    )(x_flat, wwt, wh)

    return out_flat.reshape(n, c, OUT_H, OUT_W)


def _reference_bilinear_numpy(x: np.ndarray, out_h: int, out_w: int) -> np.ndarray:
    """Gather-based reference implementing PyTorch bilinear, align_corners=False."""
    n, c, h, w = x.shape
    xf = x.astype(np.float64)
    ys = np.maximum((np.arange(out_h) + 0.5) * (h / out_h) - 0.5, 0.0)
    xs = np.maximum((np.arange(out_w) + 0.5) * (w / out_w) - 0.5, 0.0)
    y0 = np.minimum(np.floor(ys).astype(np.int64), h - 1)
    x0 = np.minimum(np.floor(xs).astype(np.int64), w - 1)
    y1 = np.minimum(y0 + 1, h - 1)
    x1 = np.minimum(x0 + 1, w - 1)
    wy1 = ys - y0
    wy0 = 1.0 - wy1
    wx1 = xs - x0
    wx0 = 1.0 - wx1
    top = xf[:, :, y0][:, :, :, x0] * wx0 + xf[:, :, y0][:, :, :, x1] * wx1
    bot = xf[:, :, y1][:, :, :, x0] * wx0 + xf[:, :, y1][:, :, :, x1] * wx1
    out = top * wy0[None, None, :, None] + bot * wy1[None, None, :, None]
    return out.astype(np.float32)


if __name__ == "__main__":
    key = jax.random.PRNGKey(0)
    N, C, H, W = 2, 4, 16, 16
    x = jax.random.normal(key, (N, C, H, W), dtype=jnp.float32)

    out = jax.block_until_ready(interpolate_to_inception(x))
    assert out.shape == (N, C, OUT_H, OUT_W), out.shape

    # 1) Plumbing check: same separable weights applied via plain XLA einsum.
    wh_np = _bilinear_weight_matrix(H, OUT_H)
    ww_np = _bilinear_weight_matrix(W, OUT_W)
    ref_plumb = jnp.einsum(
        "oh,nchw,pw->ncop", jnp.asarray(wh_np), x, jnp.asarray(ww_np)
    )
    np.testing.assert_allclose(
        np.asarray(out), np.asarray(ref_plumb), rtol=1e-5, atol=1e-5
    )

    # 2) Semantics check: independent gather-based PyTorch-equivalent reference.
    #    Tolerance is modest to stay robust to reduced-precision MXU passes.
    ref_semantic = _reference_bilinear_numpy(np.asarray(x), OUT_H, OUT_W)
    np.testing.assert_allclose(np.asarray(out), ref_semantic, rtol=1e-2, atol=1e-2)

    print("KERNEL_OK")
</pallas_src>

<mosaic_0001>
module attributes {stable_mosaic.version = 11 : i64} {
  func.func @kernel(%arg0: i32, %arg1: memref<4x16x16xf32, #tpu.memory_space<vmem>>, %arg2: memref<16x299xf32, #tpu.memory_space<vmem>>, %arg3: memref<299x16xf32, #tpu.memory_space<vmem>>, %arg4: memref<4x299x299xf32, #tpu.memory_space<vmem>>) attributes {dimension_semantics = [#tpu.dimension_semantics<parallel>], iteration_bounds = array<i64: 2>, scalar_prefetch = 0 : i64, scratch_operands = 0 : i64, tpu.core_type = #tpu.core_type<tc>, window_params = [{transform_indices = @transform_0, window_bounds = array<i64: 4, 16, 16>}, {pipeline_mode = #tpu.pipeline_mode<synchronous>, transform_indices = @transform_1, window_bounds = array<i64: 16, 299>}, {pipeline_mode = #tpu.pipeline_mode<synchronous>, transform_indices = @transform_2, window_bounds = array<i64: 299, 16>}, {transform_indices = @transform_3, window_bounds = array<i64: 4, 299, 299>}]} {
    %c0 = arith.constant 0 : index
    %c0_0 = arith.constant 0 : index
    %0 = vector.load %arg2[%c0, %c0_0] : memref<16x299xf32, #tpu.memory_space<vmem>>, vector<16x299xf32>
    %c0_1 = arith.constant 0 : index
    %c0_2 = arith.constant 0 : index
    %1 = vector.load %arg3[%c0_1, %c0_2] : memref<299x16xf32, #tpu.memory_space<vmem>>, vector<299x16xf32>
    %c0_i32 = arith.constant 0 : i32
    %c4_i32 = arith.constant 4 : i32
    %2 = arith.addi %c0_i32, %c4_i32 : i32
    %c1_i32 = arith.constant 1 : i32
    scf.for %arg5 = %c0_i32 to %2 step %c1_i32  : i32 {
      %3 = arith.index_cast %arg5 : i32 to index
      %c0_4 = arith.constant 0 : index
      %c0_5 = arith.constant 0 : index
      %4 = vector.load %arg1[%3, %c0_4, %c0_5] : memref<4x16x16xf32, #tpu.memory_space<vmem>>, vector<1x16x16xf32>
      %5 = vector.shape_cast %4 : vector<1x16x16xf32> to vector<16x16xf32>
      %cst = arith.constant dense<0.000000e+00> : vector<16x299xf32>
      %6 = tpu.matmul %5, %0, %cst {dimension_numbers = #tpu.dot_dimension_numbers<[1], [0], [0], [1], [0, 0, 1, 1], [], []>} : vector<16x16xf32>, vector<16x299xf32>, vector<16x299xf32> -> vector<16x299xf32>
      %cst_6 = arith.constant dense<0.000000e+00> : vector<299x299xf32>
      %7 = tpu.matmul %1, %6, %cst_6 {dimension_numbers = #tpu.dot_dimension_numbers<[1], [0], [0], [1], [0, 0, 1, 1], [], []>} : vector<299x16xf32>, vector<16x299xf32>, vector<299x299xf32> -> vector<299x299xf32>
      %8 = arith.index_cast %arg5 : i32 to index
      %c0_7 = arith.constant 0 : index
      %c0_8 = arith.constant 0 : index
      %9 = vector.load %arg4[%8, %c0_7, %c0_8] : memref<4x299x299xf32, #tpu.memory_space<vmem>>, vector<1x299x299xf32>
      %10 = vector.shape_cast %9 : vector<1x299x299xf32> to vector<299x299xf32>
      %11 = vector.shape_cast %7 : vector<299x299xf32> to vector<1x299x299xf32>
      tpu.vector_store %arg4[%8, %c0_7, %c0_8], %11 {strides = array<i32>} : memref<4x299x299xf32, #tpu.memory_space<vmem>>, vector<1x299x299xf32>,
    }
    %c4_i32_3 = arith.constant 4 : i32
    return
  }
  func.func @transform_0(%arg0: i32) -> (i32, i32, i32) {
    %c0_i32 = arith.constant 0 : i32
    %c0_i32_0 = arith.constant 0 : i32
    %c0_i32_1 = arith.constant 0 : i32
    return %arg0, %c0_i32, %c0_i32_0 : i32, i32, i32
  }
  func.func @transform_1(%arg0: i32) -> (i32, i32) {
    %c0_i32 = arith.constant 0 : i32
    %c0_i32_0 = arith.constant 0 : i32
    %c0_i32_1 = arith.constant 0 : i32
    return %c0_i32, %c0_i32_0 : i32, i32
  }
  func.func @transform_2(%arg0: i32) -> (i32, i32) {
    %c0_i32 = arith.constant 0 : i32
    %c0_i32_0 = arith.constant 0 : i32
    %c0_i32_1 = arith.constant 0 : i32
    return %c0_i32, %c0_i32_0 : i32, i32
  }
  func.func @transform_3(%arg0: i32) -> (i32, i32, i32) {
    %c0_i32 = arith.constant 0 : i32
    %c0_i32_0 = arith.constant 0 : i32
    %c0_i32_1 = arith.constant 0 : i32
    return %arg0, %c0_i32, %c0_i32_0 : i32, i32, i32
  }
}

</mosaic_0001>

<llo_original>
// kernel: tpu_custom_call.1
$region0: #{tpu_custom_call.1}
  #allocation0 [shape = 'u32[]', space=smem, size = 0x4, offset = 0x4, fixed_abs, tag = 'smem constant byte address 0x4 - core index']
  #allocation1 [shape = 'u32[144,128]{1,0:T(1,128)}', space=vmem, size = 0x12000, scoped, tag = 'internal scratch']
  %s0 = inlined_call_operand.hbm [shape: f32[8,16,16], index: 0, kind: input, shape index: {}]
  %s1 = inlined_call_operand.hbm [shape: f32[16,299], index: 1, kind: input, shape index: {}]
  %s2 = inlined_call_operand.vmem [shape: f32[299,16], index: 2, kind: input, shape index: {}]
  %s3 = inlined_call_operand.vmem [shape: f32[8,299,299], index: 3, kind: output, shape index: {}]
  %s4 = sld [smem:[#allocation0]]
  $region60: #{tpu_custom_call.1} parent=0
    _
  %s6 = ssub.s32 1, %s4
  %s7 = scalar_select 0, %s6, %s4
  $region1: #{tpu_custom_call.1} parent=0
    #allocation2 [shape = 'u8[65536]{0}', space=vmem, size = 0x10000, scoped, tag = 'input window, operand 0']
    #allocation3 [shape = 's32[2]{0}', space=sflag, size = 0x8, scoped, tag = 'scoped memory for tpu_custom_call.1']
    #allocation4 [shape = 'u8[24576]{0}', space=vmem, size = 0x6000, scoped, tag = 'input window, operand 1, single buffered']
    #allocation5 [shape = 's32[1]{0}', space=sflag, size = 0x4, scoped, tag = 'scoped memory for tpu_custom_call.1']
    %8 = vsyncpa [#allocation3], 0
    %s9 = scalar_lea.sflag [#allocation3], 1
    %10 = vsyncpa %s9, 0
    %11 = vsyncpa [#allocation5], 0
    loop: start=0, step=1, limit=4
    $region2: #{tpu_custom_call.1} parent=1 // loop_pre_header
      _
    $region3: #{tpu_custom_call.1} parent=1 // loop_header
      %s13 = sphi 0, %s17
      %p14 = scmp.ge.s32.totalorder %s13, 4
      %s23 = sphi 0, %s25
      %s26 = sphi 0, %s23
      %s27 = sphi 0, %s26
      %s43 = sphi 0, %s27
      %s47 = sphi 0, %s47
      %s49 = sphi 0, %s47
      %s50 = sphi 0, %s49
      %s64 = sphi 0, %s50
      %s68 = sphi 0, %s68
      %s70 = sphi 0, %s68
      %s71 = sphi 0, %s70
      %s85 = sphi 0, %s71
      %s91 = sphi 0, %s93
      %s94 = sphi 0, %s91
      %s95 = sphi 0, %s94
      %s111 = sphi 0, %s95
    $region4: #{tpu_custom_call.1} parent=1 // loop_header_branch
      %16 = sbr.rel (%p14) target = $region8
    $region5: #{tpu_custom_call.1} parent=1 // loop_body
      %s18 = ssub.s32 %s13, 1
      %s19 = ssub.s32 %s13, 2
      %s20 = sadd.s32 %s13, 1
      %s21 = ssub.s32 %s13, %s20
      %p22 = scmp.eq.s32.totalorder %s21, 0
      %s24 = sadd.s32 %s23, 1
      %s25 = scalar_select %p22, %s23, %s24
      %p28 = pneg %p22
      %p29 = scmp.eq.s32.totalorder %s13, 1
      %p30 = por %p28, %p29
      %p31 = scmp.ne.s32.totalorder %s23, %s26
      %p32 = scmp.eq.s32.totalorder %s13, 0
      %p33 = por %p31, %p32
      %p34 = scmp.ne.s32.totalorder %s23, %s26
      %p35 = scmp.eq.s32.totalorder %s18, 1
      %p36 = por %p34, %p35
      %p37 = scmp.ne.s32.totalorder %s26, %s27
      %p38 = scmp.eq.s32.totalorder %s18, 0
      %p39 = por %p37, %p38
      %p40 = scmp.ne.s32.totalorder %s26, %s27
      %p41 = scmp.eq.s32.totalorder %s19, 1
      %p42 = por %p40, %p41
      %p44 = scmp.ne.s32.totalorder %s27, %s43
      %p45 = scmp.eq.s32.totalorder %s19, 0
      %p46 = por %p44, %p45
      %s48 = sadd.s32 %s47, 1
      %p51 = scmp.eq.s32.totalorder %s13, 1
      %p52 = scmp.ne.s32.totalorder %s47, %s49
      %p53 = scmp.eq.s32.totalorder %s13, 0
      %p54 = por %p52, %p53
      %p55 = scmp.ne.s32.totalorder %s47, %s49
      %p56 = scmp.eq.s32.totalorder %s18, 1
      %p57 = por %p55, %p56
      %p58 = scmp.ne.s32.totalorder %s49, %s50
      %p59 = scmp.eq.s32.totalorder %s18, 0
      %p60 = por %p58, %p59
      %p61 = scmp.ne.s32.totalorder %s49, %s50
      %p62 = scmp.eq.s32.totalorder %s19, 1
      %p63 = por %p61, %p62
      %p65 = scmp.ne.s32.totalorder %s50, %s64
      %p66 = scmp.eq.s32.totalorder %s19, 0
      %p67 = por %p65, %p66
      %s69 = sadd.s32 %s68, 1
      %p72 = scmp.eq.s32.totalorder %s13, 1
      %p73 = scmp.ne.s32.totalorder %s68, %s70
      %p74 = scmp.eq.s32.totalorder %s13, 0
      %p75 = por %p73, %p74
      %p76 = scmp.ne.s32.totalorder %s68, %s70
      %p77 = scmp.eq.s32.totalorder %s18, 1
      %p78 = por %p76, %p77
      %p79 = scmp.ne.s32.totalorder %s70, %s71
      %p80 = scmp.eq.s32.totalorder %s18, 0
      %p81 = por %p79, %p80
      %p82 = scmp.ne.s32.totalorder %s70, %s71
      %p83 = scmp.eq.s32.totalorder %s19, 1
      %p84 = por %p82, %p83
      %p86 = scmp.ne.s32.totalorder %s71, %s85
      %p87 = scmp.eq.s32.totalorder %s19, 0
      %p88 = por %p86, %p87
      %s89 = ssub.s32 %s13, %s20
      %p90 = scmp.eq.s32.totalorder %s89, 0
      %s92 = sadd.s32 %s91, 1
      %s93 = scalar_select %p90, %s91, %s92
      %p96 = pneg %p90
      %p97 = scmp.eq.s32.totalorder %s13, 1
      %p98 = por %p96, %p97
      %p99 = scmp.ne.s32.totalorder %s91, %s94
      %p100 = scmp.eq.s32.totalorder %s13, 0
      %p101 = por %p99, %p100
      %p102 = scmp.ne.s32.totalorder %s91, %s94
      %p103 = scmp.eq.s32.totalorder %s18, 1
      %p104 = por %p102, %p103
      %p105 = scmp.ne.s32.totalorder %s94, %s95
      %p106 = scmp.eq.s32.totalorder %s18, 0
      %p107 = por %p105, %p106
      %p108 = scmp.ne.s32.totalorder %s94, %s95
      %p109 = scmp.eq.s32.totalorder %s19, 1
      %p110 = por %p108, %p109
      %p112 = scmp.ne.s32.totalorder %s95, %s111
      %p113 = scmp.eq.s32.totalorder %s19, 0
      %p114 = por %p112, %p113
      %p115 = scmp.le.s32.totalorder 1, %s13
      %p116 = scmp.lt.s32.totalorder %s13, 3
      %p117 = pnand %p115, %p116
      %p118 = pneg %p117
      // Predicated region
      $region9: #{tpu_custom_call.1} parent=5 // pred_check
        _
      $region10: #{tpu_custom_call.1} parent=5 // pred_check_branch
        %120 = sbr.rel (%p117) target = $region12
      $region11: #{tpu_custom_call.1} parent=5 // pred_region
        %s121 = ssub.s32 %s13, 1
        // Predicated region
        $region13: #{tpu_custom_call.1} parent=11 // pred_check
          %p122 = pneg %p60
        $region14: #{tpu_custom_call.1} parent=11 // pred_check_branch
          %124 = sbr.rel (%p122) target = $region16
        $region15: #{tpu_custom_call.1} parent=11 // pred_region
          %s126 = ssub.s32 768, 768
          %127 = vsyncadd [#allocation5], %s126
          %s128 = sshll.u32 [#allocation4], 4
          %s129 = int_to_ptr.vmem [resolvable:$true] %s128
          %134 = dma.hbm_to_vmem [thread:$0]  %s1, 768, %s129, [#allocation5], 384, 384, 24
        $region16: #{tpu_custom_call.1} parent=11 // pred_fallthru
          _
        // Predicated region
        $region17: #{tpu_custom_call.1} parent=11 // pred_check
          %p135 = pneg %p81
        $region18: #{tpu_custom_call.1} parent=11 // pred_check_branch
          %137 = sbr.rel (%p135) target = $region20
        $region19: #{tpu_custom_call.1} parent=11 // pred_region
          _
        $region20: #{tpu_custom_call.1} parent=11 // pred_fallthru
          _
      $region12: #{tpu_custom_call.1} parent=5 // pred_fallthru
        _
      %p138 = scmp.lt.s32.totalorder %s13, 2
      // Predicated region
      $region21: #{tpu_custom_call.1} parent=5 // pred_check
        %p139 = pneg %p138
      $region22: #{tpu_custom_call.1} parent=5 // pred_check_branch
        %141 = sbr.rel (%p139) target = $region24
      $region23: #{tpu_custom_call.1} parent=5 // pred_region
        // Predicated region
        $region25: #{tpu_custom_call.1} parent=23 // pred_check
          %p142 = pneg %p33
        $region26: #{tpu_custom_call.1} parent=23 // pred_check_branch
          %144 = sbr.rel (%p142) target = $region28
        $region27: #{tpu_custom_call.1} parent=23 // pred_region
          %s145 = sand.u32 %s23, 1
          %s146 = scalar_lea.sflag [#allocation3], %s145
          %s147 = sand.u32 %s23, 1
          %s148 = smul.addr %s147, 64
          %s149 = scalar_lea.vmem [#allocation2], %s148
          %s150 = smul.u32 4, %s13
          %s152 = ssub.s32 1024, 1024
          %153 = vsyncadd %s146, %s152
          %s154 = smul.addr %s150, 2
          %s155 = smul.addr %s154, 128
          %s156 = scalar_lea.hbm %s0, %s155
          %s157 = sshll.u32 %s149, 4
          %s158 = int_to_ptr.vmem [resolvable:$true] %s157
          %163 = dma.hbm_to_vmem [thread:$0]  %s156, 1024, %s158, %s146, 128, 128, 8
        $region28: #{tpu_custom_call.1} parent=23 // pred_fallthru
          _
      $region24: #{tpu_custom_call.1} parent=5 // pred_fallthru
        _
      %p164 = scmp.le.s32.totalorder 1, %s13
      %p165 = scmp.lt.s32.totalorder %s13, 3
      %p166 = pnand %p164, %p165
      %p167 = pneg %p166
      // Predicated region
      $region29: #{tpu_custom_call.1} parent=5 // pred_check
        _
      $region30: #{tpu_custom_call.1} parent=5 // pred_check_branch
        %169 = sbr.rel (%p166) target = $region32
      $region31: #{tpu_custom_call.1} parent=5 // pred_region
        %s170 = ssub.s32 %s13, 1
        %s171 = sand.u32 %s26, 1
        %s172 = scalar_lea.sflag [#allocation3], %s171
        %s173 = sand.u32 %s26, 1
        %s174 = smul.addr %s173, 64
        %s175 = scalar_lea.vmem [#allocation2], %s174
        // Predicated region
        $region33: #{tpu_custom_call.1} parent=31 // pred_check
          %p176 = pneg %p39
        $region34: #{tpu_custom_call.1} parent=31 // pred_check_branch
          %178 = sbr.rel (%p176) target = $region36
        $region35: #{tpu_custom_call.1} parent=31 // pred_region
          %179 = dma.done %s172, 1024
        $region36: #{tpu_custom_call.1} parent=31 // pred_fallthru
          _
        // Predicated region
        $region37: #{tpu_custom_call.1} parent=31 // pred_check
          %p180 = pneg %p60
        $region38: #{tpu_custom_call.1} parent=31 // pred_check_branch
          %182 = sbr.rel (%p180) target = $region40
        $region39: #{tpu_custom_call.1} parent=31 // pred_region
          %183 = dma.done [#allocation5], 768
        $region40: #{tpu_custom_call.1} parent=31 // pred_fallthru
          _
        %s184 = sand.u32 %s26, 1
        %s185 = scalar_lea.sflag [#allocation3], %s184
        %s186 = sand.u32 %s26, 1
        %s187 = smul.addr %s186, 64
        %s188 = scalar_lea.vmem [#allocation2], %s187
        %p189 = pneg %p39
        %p190 = pneg %p36
        %p191 = pneg %p60
        %p192 = pneg %p57
        %p193 = pneg %p81
        %p194 = pneg %p78
        %p195 = pneg %p107
        %p196 = pneg %p104
        %s197 = smul.u32 4, %s18
        %p198 = scmp.lt.s32.totalorder %s197, 7
        %s199 = scalar_select %p198, %s197, 7
        %s200 = smul.addr %s199, 114
        %s201 = smul.addr %s200, 8
        %s202 = scalar_lea.vmem %s3, %s201
        %s203 = smul.u32 4, %s18
        %s204 = smul.u32 4, %s18
        %p205 = scmp.lt.s32.totalorder %s204, 7
        %s206 = scalar_select %p205, %s204, 7
        %s207 = smul.addr %s206, 114
        %s208 = smul.addr %s207, 8
        %s209 = scalar_lea.vmem %s3, %s208
        %s210 = smul.u32 4, %s18
        %v211 = vld [vmem:[#allocation4] sm:$0xff]
        %v212 = vld [vmem:[#allocation4 + $0x8] sm:$0xff]
        %v213 = vld [vmem:[#allocation4 + $0x10] sm:$0xff]
        %v214 = vld [vmem:[#allocation4 + $0x18] sm:$0xff]
        %v215 = vld [vmem:[#allocation4 + $0x20] sm:$0xff]
        %v216 = vld [vmem:[#allocation4 + $0x28] sm:$0xff]
        %v217 = vld [vmem:[%s2] sm:$0xff]
        %v218 = vld [vmem:[%s2 + $0x8] sm:$0xff]
        %v219 = vld [vmem:[%s2 + $0x10] sm:$0xff]
        %v220 = vld [vmem:[%s2 + $0x18] sm:$0xff]
        %v221 = vld [vmem:[%s2 + $0x20] sm:$0xff]
        %v222 = vld [vmem:[%s2 + $0x28] sm:$0xff]
        %v223 = vld [vmem:[%s2 + $0x30] sm:$0xff]
        %v224 = vld [vmem:[%s2 + $0x38] sm:$0xff]
        %v225 = vld [vmem:[%s2 + $0x40] sm:$0xff]
        %v226 = vld [vmem:[%s2 + $0x48] sm:$0xff]
        %v227 = vld [vmem:[%s2 + $0x50] sm:$0xff]
        %v228 = vld [vmem:[%s2 + $0x58] sm:$0xff]
        %v229 = vld [vmem:[%s2 + $0x60] sm:$0xff]
        %v230 = vld [vmem:[%s2 + $0x68] sm:$0xff]
        %v231 = vld [vmem:[%s2 + $0x70] sm:$0xff]
        %v232 = vld [vmem:[%s2 + $0x78] sm:$0xff]
        %v233 = vld [vmem:[%s2 + $0x80] sm:$0xff]
        %v234 = vld [vmem:[%s2 + $0x88] sm:$0xff]
        %v235 = vld [vmem:[%s2 + $0x90] sm:$0xff]
        %v236 = vld [vmem:[%s2 + $0x98] sm:$0xff]
        %v237 = vld [vmem:[%s2 + $0xa0] sm:$0xff]
        %v238 = vld [vmem:[%s2 + $0xa8] sm:$0xff]
        %v239 = vld [vmem:[%s2 + $0xb0] sm:$0xff]
        %v240 = vld [vmem:[%s2 + $0xb8] sm:$0xff]
        %v241 = vld [vmem:[%s2 + $0xc0] sm:$0xff]
        %v242 = vld [vmem:[%s2 + $0xc8] sm:$0xff]
        %v243 = vld [vmem:[%s2 + $0xd0] sm:$0xff]
        %v244 = vld [vmem:[%s2 + $0xd8] sm:$0xff]
        %v245 = vld [vmem:[%s2 + $0xe0] sm:$0xff]
        %v246 = vld [vmem:[%s2 + $0xe8] sm:$0xff]
        %v247 = vld [vmem:[%s2 + $0xf0] sm:$0xff]
        %v248 = vld [vmem:[%s2 + $0xf8] sm:$0xff]
        %v249 = vld [vmem:[%s2 + $0x100] sm:$0xff]
        %v250 = vld [vmem:[%s2 + $0x108] sm:$0xff]
        %v251 = vld [vmem:[%s2 + $0x110] sm:$0xff]
        %v252 = vld [vmem:[%s2 + $0x118] sm:$0xff]
        %v253 = vld [vmem:[%s2 + $0x120] sm:$0xff]
        %v254 = vld [vmem:[%s2 + $0x128] sm:$0x7]
        loop: start=0, step=1, limit=4
        $region41: #{tpu_custom_call.1} parent=31 // loop_pre_header
          _
        $region42: #{tpu_custom_call.1} parent=31 // loop_header
          %s256 = sphi 0, %s260
          %p257 = scmp.ge.s32.totalorder %s256, 4
        $region43: #{tpu_custom_call.1} parent=31 // loop_header_branch
          %259 = sbr.rel (%p257) target = $region47
        $region44: #{tpu_custom_call.1} parent=31 // loop_body
          %s261 = smul.u32 %s256, 16
          %s262 = scalar_lea.vmem %s175, %s261 [#allocation2]
          %v263 = vld [vmem:[%s262] sm:$0xff]
          %v264 = vld [vmem:[%s262 + $0x8] sm:$0xff]
          %vm265 = vcmask 130048
          %v267 = vsel %vm265, %v263, 0
          %v270 = vsel %vm265, %v264, 0
          %272 = vmatprep.subr.mxu0 0.0
          %273 = vmatpush1.msra.mxu0 0.0
          %274 = vmatprep.subr.mxu0 0.0
          %275 = vmatpush1.msra.mxu0 0.0
          %276 = vmatprep.subr.mxu0 0.0
          %277 = vmatpush1.msra.mxu0 0.0
          %278 = vmatprep.subr.mxu0 0.0
          %279 = vmatpush1.msra.mxu0 0.0
          %280 = vmatprep.subr.mxu0 0.0
          %281 = vmatpush1.msra.mxu0 0.0
          %282 = vmatprep.subr.mxu0 0.0
          %283 = vmatpush1.msra.mxu0 0.0
          %284 = vmatprep.subr.mxu0 0.0
          %285 = vmatpush1.msra.mxu0 0.0
          %286 = vmatprep.subr.mxu0 0.0
          %287 = vmatpush1.msra.mxu0 0.0
          %288 = vmatprep.subr.mxu0 0.0
          %289 = vmatpush1.msra.mxu0 0.0
          %290 = vmatprep.subr.mxu0 0.0
          %291 = vmatpush1.msra.mxu0 0.0
          %292 = vmatprep.subr.mxu0 0.0
          %293 = vmatpush1.msra.mxu0 0.0
          %294 = vmatprep.subr.mxu0 0.0
          %295 = vmatpush1.msra.mxu0 0.0
          %296 = vmatprep.subr.mxu0 0.0
          %297 = vmatpush1.msra.mxu0 0.0
          %298 = vmatprep.subr.mxu0 0.0
          %299 = vmatpush1.msra.mxu0 0.0
          %300 = vmatprep.subr.mxu0 %v215
          %301 = vmatpush1.msra.mxu0 %v214
          %302 = vmatprep.subr.mxu0 %v212
          %303 = vmatpush1.msra.mxu0 %v211
          %304 = vmatprep.subr.mxu0 0.0
          %305 = vmatpush2.msra.mxu0 0.0
          %306 = vmatprep.subr.mxu0 0.0
          %307 = vmatpush2.msra.mxu0 0.0
          %308 = vmatprep.subr.mxu0 0.0
          %309 = vmatpush2.msra.mxu0 0.0
          %310 = vmatprep.subr.mxu0 0.0
          %311 = vmatpush2.msra.mxu0 0.0
          %312 = vmatprep.subr.mxu0 0.0
          %313 = vmatpush2.msra.mxu0 0.0
          %314 = vmatprep.subr.mxu0 0.0
          %315 = vmatpush2.msra.mxu0 0.0
          %316 = vmatprep.subr.mxu0 0.0
          %317 = vmatpush2.msra.mxu0 0.0
          %318 = vmatprep.subr.mxu0 0.0
          %319 = vmatpush2.msra.mxu0 0.0
          %320 = vmatprep.subr.mxu0 0.0
          %321 = vmatpush2.msra.mxu0 0.0
          %322 = vmatprep.subr.mxu0 0.0
          %323 = vmatpush2.msra.mxu0 0.0
          %324 = vmatprep.subr.mxu0 0.0
          %325 = vmatpush2.msra.mxu0 0.0
          %326 = vmatprep.subr.mxu0 0.0
          %327 = vmatpush2.msra.mxu0 0.0
          %328 = vmatprep.subr.mxu0 0.0
          %329 = vmatpush2.msra.mxu0 0.0
          %330 = vmatprep.subr.mxu0 0.0
          %331 = vmatpush2.msra.mxu0 0.0
          %332 = vmatprep.subr.mxu0 0.0
          %333 = vmatpush2.msra.mxu0 0.0
          %334 = vmatprep.subr.mxu0 0.0
          %335 = vmatpush2.msra.mxu0 0.0
          %336 = vmatprep.mubr.f32.mxu0 0.0
          %337 = vmatmul.mubr.f32.gmra.mxu0 %v267
          %v338 = vpop.f32.mrf.mxu0
          %v339 = vadd.f32 0.0, %v338
          %v340 = vpop.f32.mrf.mxu0
          %v341 = vadd.f32 0.0, %v340
          %342 = vmatprep.mubr.f32.mxu0 0.0
          %343 = vmatmul.mubr.f32.gmra.mxu0 %v270
          %v344 = vpop.f32.mrf.mxu0
          %v345 = vadd.f32 0.0, %v344
          %v346 = vpop.f32.mrf.mxu0
          %v347 = vadd.f32 0.0, %v346
          %348 = vdwg.mxu0
          %349 = vmatprep.subr.mxu0 0.0
          %350 = vmatpush1.msra.mxu0 0.0
          %351 = vmatprep.subr.mxu0 0.0
          %352 = vmatpush1.msra.mxu0 0.0
          %353 = vmatprep.subr.mxu0 0.0
          %354 = vmatpush1.msra.mxu0 0.0
          %355 = vmatprep.subr.mxu0 0.0
          %356 = vmatpush1.msra.mxu0 0.0
          %357 = vmatprep.subr.mxu0 0.0
          %358 = vmatpush1.msra.mxu0 0.0
          %359 = vmatprep.subr.mxu0 0.0
          %360 = vmatpush1.msra.mxu0 0.0
          %361 = vmatprep.subr.mxu0 0.0
          %362 = vmatpush1.msra.mxu0 0.0
          %363 = vmatprep.subr.mxu0 0.0
          %364 = vmatpush1.msra.mxu0 0.0
          %365 = vmatprep.subr.mxu0 0.0
          %366 = vmatpush1.msra.mxu0 0.0
          %367 = vmatprep.subr.mxu0 0.0
          %368 = vmatpush1.msra.mxu0 0.0
          %369 = vmatprep.subr.mxu0 0.0
          %370 = vmatpush1.msra.mxu0 0.0
          %371 = vmatprep.subr.mxu0 0.0
          %372 = vmatpush1.msra.mxu0 0.0
          %373 = vmatprep.subr.mxu0 0.0
          %374 = vmatpush1.msra.mxu0 0.0
          %375 = vmatprep.subr.mxu0 0.0
          %376 = vmatpush1.msra.mxu0 0.0
          %377 = vmatprep.subr.mxu0 0.0
          %378 = vmatpush1.msra.mxu0 %v216
          %379 = vmatprep.subr.mxu0 0.0
          %380 = vmatpush1.msra.mxu0 %v213
          %381 = vmatprep.subr.mxu0 0.0
          %382 = vmatpush2.msra.mxu0 0.0
          %383 = vmatprep.subr.mxu0 0.0
          %384 = vmatpush2.msra.mxu0 0.0
          %385 = vmatprep.subr.mxu0 0.0
          %386 = vmatpush2.msra.mxu0 0.0
          %387 = vmatprep.subr.mxu0 0.0
          %388 = vmatpush2.msra.mxu0 0.0
          %389 = vmatprep.subr.mxu0 0.0
          %390 = vmatpush2.msra.mxu0 0.0
          %391 = vmatprep.subr.mxu0 0.0
          %392 = vmatpush2.msra.mxu0 0.0
          %393 = vmatprep.subr.mxu0 0.0
          %394 = vmatpush2.msra.mxu0 0.0
          %395 = vmatprep.subr.mxu0 0.0
          %396 = vmatpush2.msra.mxu0 0.0
          %397 = vmatprep.subr.mxu0 0.0
          %398 = vmatpush2.msra.mxu0 0.0
          %399 = vmatprep.subr.mxu0 0.0
          %400 = vmatpush2.msra.mxu0 0.0
          %401 = vmatprep.subr.mxu0 0.0
          %402 = vmatpush2.msra.mxu0 0.0
          %403 = vmatprep.subr.mxu0 0.0
          %404 = vmatpush2.msra.mxu0 0.0
          %405 = vmatprep.subr.mxu0 0.0
          %406 = vmatpush2.msra.mxu0 0.0
          %407 = vmatprep.subr.mxu0 0.0
          %408 = vmatpush2.msra.mxu0 0.0
          %409 = vmatprep.subr.mxu0 0.0
          %410 = vmatpush2.msra.mxu0 0.0
          %411 = vmatprep.subr.mxu0 0.0
          %412 = vmatpush2.msra.mxu0 0.0
          %413 = vmatprep.mubr.f32.mxu0 0.0
          %414 = vmatmul.mubr.f32.gmra.mxu0 %v267
          %v415 = vpop.f32.mrf.mxu0
          %v416 = vadd.f32 0.0, %v415
          %v417 = vpop.f32.mrf.mxu0
          %418 = vmatprep.mubr.f32.mxu0 0.0
          %419 = vmatmul.mubr.f32.gmra.mxu0 %v270
          %v420 = vpop.f32.mrf.mxu0
          %v421 = vadd.f32 0.0, %v420
          %v422 = vpop.f32.mrf.mxu0
          %423 = vdwg.mxu0
          %v425 = vsel %vm265, %v217, 0
          %v428 = vsel %vm265, %v218, 0
          %v431 = vsel %vm265, %v219, 0
          %v434 = vsel %vm265, %v220, 0
          %v437 = vsel %vm265, %v221, 0
          %v440 = vsel %vm265, %v222, 0
          %v443 = vsel %vm265, %v223, 0
          %v446 = vsel %vm265, %v224, 0
          %v449 = vsel %vm265, %v225, 0
          %v452 = vsel %vm265, %v226, 0
          %v455 = vsel %vm265, %v227, 0
          %v458 = vsel %vm265, %v228, 0
          %v461 = vsel %vm265, %v229, 0
          %v464 = vsel %vm265, %v230, 0
          %v467 = vsel %vm265, %v231, 0
          %v470 = vsel %vm265, %v232, 0
          %v473 = vsel %vm265, %v233, 0
          %v476 = vsel %vm265, %v234, 0
          %v479 = vsel %vm265, %v235, 0
          %v482 = vsel %vm265, %v236, 0
          %v485 = vsel %vm265, %v237, 0
          %v488 = vsel %vm265, %v238, 0
          %v491 = vsel %vm265, %v239, 0
          %v494 = vsel %vm265, %v240, 0
          %v497 = vsel %vm265, %v241, 0
          %v500 = vsel %vm265, %v242, 0
          %v503 = vsel %vm265, %v243, 0
          %v506 = vsel %vm265, %v244, 0
          %v509 = vsel %vm265, %v245, 0
          %v512 = vsel %vm265, %v246, 0
          %v515 = vsel %vm265, %v247, 0
          %v518 = vsel %vm265, %v248, 0
          %v521 = vsel %vm265, %v249, 0
          %v524 = vsel %vm265, %v250, 0
          %v527 = vsel %vm265, %v251, 0
          %v530 = vsel %vm265, %v252, 0
          %v533 = vsel %vm265, %v253, 0
          %v536 = vsel %vm265, %v254, 0
          %538 = vmatprep.subr.mxu0 0.0
          %539 = vmatpush1.msra.mxu0 0.0
          %540 = vmatprep.subr.mxu0 0.0
          %541 = vmatpush1.msra.mxu0 0.0
          %542 = vmatprep.subr.mxu0 0.0
          %543 = vmatpush1.msra.mxu0 0.0
          %544 = vmatprep.subr.mxu0 0.0
          %545 = vmatpush1.msra.mxu0 0.0
          %546 = vmatprep.subr.mxu0 0.0
          %547 = vmatpush1.msra.mxu0 0.0
          %548 = vmatprep.subr.mxu0 0.0
          %549 = vmatpush1.msra.mxu0 0.0
          %550 = vmatprep.subr.mxu0 0.0
          %551 = vmatpush1.msra.mxu0 0.0
          %552 = vmatprep.subr.mxu0 0.0
          %553 = vmatpush1.msra.mxu0 0.0
          %554 = vmatprep.subr.mxu0 0.0
          %555 = vmatpush1.msra.mxu0 0.0
          %556 = vmatprep.subr.mxu0 0.0
          %557 = vmatpush1.msra.mxu0 0.0
          %558 = vmatprep.subr.mxu0 0.0
          %559 = vmatpush1.msra.mxu0 0.0
          %560 = vmatprep.subr.mxu0 0.0
          %561 = vmatpush1.msra.mxu0 0.0
          %562 = vmatprep.subr.mxu0 0.0
          %563 = vmatpush1.msra.mxu0 0.0
          %564 = vmatprep.subr.mxu0 0.0
          %565 = vmatpush1.msra.mxu0 0.0
          %566 = vmatprep.subr.mxu0 %v347
          %567 = vmatpush1.msra.mxu0 %v345
          %568 = vmatprep.subr.mxu0 %v341
          %569 = vmatpush1.msra.mxu0 %v339
          %570 = vmatprep.subr.mxu0 0.0
          %571 = vmatpush2.msra.mxu0 0.0
          %572 = vmatprep.subr.mxu0 0.0
          %573 = vmatpush2.msra.mxu0 0.0
          %574 = vmatprep.subr.mxu0 0.0
          %575 = vmatpush2.msra.mxu0 0.0
          %576 = vmatprep.subr.mxu0 0.0
          %577 = vmatpush2.msra.mxu0 0.0
          %578 = vmatprep.subr.mxu0 0.0
          %579 = vmatpush2.msra.mxu0 0.0
          %580 = vmatprep.subr.mxu0 0.0
          %581 = vmatpush2.msra.mxu0 0.0
          %582 = vmatprep.subr.mxu0 0.0
          %583 = vmatpush2.msra.mxu0 0.0
          %584 = vmatprep.subr.mxu0 0.0
          %585 = vmatpush2.msra.mxu0 0.0
          %586 = vmatprep.subr.mxu0 0.0
          %587 = vmatpush2.msra.mxu0 0.0
          %588 = vmatprep.subr.mxu0 0.0
          %589 = vmatpush2.msra.mxu0 0.0
          %590 = vmatprep.subr.mxu0 0.0
          %591 = vmatpush2.msra.mxu0 0.0
          %592 = vmatprep.subr.mxu0 0.0
          %593 = vmatpush2.msra.mxu0 0.0
          %594 = vmatprep.subr.mxu0 0.0
          %595 = vmatpush2.msra.mxu0 0.0
          %596 = vmatprep.subr.mxu0 0.0
          %597 = vmatpush2.msra.mxu0 0.0
          %598 = vmatprep.subr.mxu0 0.0
          %599 = vmatpush2.msra.mxu0 0.0
          %600 = vmatprep.subr.mxu0 0.0
          %601 = vmatpush2.msra.mxu0 0.0
          %602 = vmatprep.mubr.f32.mxu0 0.0
          %603 = vmatmul.mubr.f32.gmra.mxu0 %v425
          %v604 = vpop.f32.mrf.mxu0
          %v605 = vadd.f32 0.0, %v604
          %v606 = vpop.f32.mrf.mxu0
          %v607 = vadd.f32 0.0, %v606
          %608 = vmatprep.mubr.f32.mxu0 0.0
          %609 = vmatmul.mubr.f32.gmra.mxu0 %v428
          %v610 = vpop.f32.mrf.mxu0
          %v611 = vadd.f32 0.0, %v610
          %v612 = vpop.f32.mrf.mxu0
          %v613 = vadd.f32 0.0, %v612
          %614 = vmatprep.mubr.f32.mxu0 0.0
          %615 = vmatmul.mubr.f32.gmra.mxu0 %v431
          %v616 = vpop.f32.mrf.mxu0
          %v617 = vadd.f32 0.0, %v616
          %v618 = vpop.f32.mrf.mxu0
          %v619 = vadd.f32 0.0, %v618
          %620 = vmatprep.mubr.f32.mxu0 0.0
          %621 = vmatmul.mubr.f32.gmra.mxu0 %v434
          %v622 = vpop.f32.mrf.mxu0
          %v623 = vadd.f32 0.0, %v622
          %v624 = vpop.f32.mrf.mxu0
          %v625 = vadd.f32 0.0, %v624
          %626 = vmatprep.mubr.f32.mxu0 0.0
          %627 = vmatmul.mubr.f32.gmra.mxu0 %v437
          %v628 = vpop.f32.mrf.mxu0
          %v629 = vadd.f32 0.0, %v628
          %v630 = vpop.f32.mrf.mxu0
          %v631 = vadd.f32 0.0, %v630
          %632 = vmatprep.mubr.f32.mxu0 0.0
          %633 = vmatmul.mubr.f32.gmra.mxu0 %v440
          %v634 = vpop.f32.mrf.mxu0
          %v635 = vadd.f32 0.0, %v634
          %v636 = vpop.f32.mrf.mxu0
          %v637 = vadd.f32 0.0, %v636
          %638 = vmatprep.mubr.f32.mxu0 0.0
          %639 = vmatmul.mubr.f32.gmra.mxu0 %v443
          %v640 = vpop.f32.mrf.mxu0
          %v641 = vadd.f32 0.0, %v640
          %v642 = vpop.f32.mrf.mxu0
          %v643 = vadd.f32 0.0, %v642
          %644 = vmatprep.mubr.f32.mxu0 0.0
          %645 = vmatmul.mubr.f32.gmra.mxu0 %v446
          %v646 = vpop.f32.mrf.mxu0
          %v647 = vadd.f32 0.0, %v646
          %v648 = vpop.f32.mrf.mxu0
          %v649 = vadd.f32 0.0, %v648
          %650 = vmatprep.mubr.f32.mxu0 0.0
          %651 = vmatmul.mubr.f32.gmra.mxu0 %v449
          %v652 = vpop.f32.mrf.mxu0
          %v653 = vadd.f32 0.0, %v652
          %v654 = vpop.f32.mrf.mxu0
          %v655 = vadd.f32 0.0, %v654
          %656 = vmatprep.mubr.f32.mxu0 0.0
          %657 = vmatmul.mubr.f32.gmra.mxu0 %v452
          %v658 = vpop.f32.mrf.mxu0
          %v659 = vadd.f32 0.0, %v658
          %v660 = vpop.f32.mrf.mxu0
          %v661 = vadd.f32 0.0, %v660
          %662 = vmatprep.mubr.f32.mxu0 0.0
          %663 = vmatmul.mubr.f32.gmra.mxu0 %v455
          %v664 = vpop.f32.mrf.mxu0
          %v665 = vadd.f32 0.0, %v664
          %v666 = vpop.f32.mrf.mxu0
          %v667 = vadd.f32 0.0, %v666
          %668 = vmatprep.mubr.f32.mxu0 0.0
          %669 = vmatmul.mubr.f32.gmra.mxu0 %v458
          %v670 = vpop.f32.mrf.mxu0
          %v671 = vadd.f32 0.0, %v670
          %v672 = vpop.f32.mrf.mxu0
          %v673 = vadd.f32 0.0, %v672
          %674 = vmatprep.mubr.f32.mxu0 0.0
          %675 = vmatmul.mubr.f32.gmra.mxu0 %v461
          %v676 = vpop.f32.mrf.mxu0
          %v677 = vadd.f32 0.0, %v676
          %v678 = vpop.f32.mrf.mxu0
          %v679 = vadd.f32 0.0, %v678
          %680 = vmatprep.mubr.f32.mxu0 0.0
          %681 = vmatmul.mubr.f32.gmra.mxu0 %v464
          %v682 = vpop.f32.mrf.mxu0
          %v683 = vadd.f32 0.0, %v682
          %v684 = vpop.f32.mrf.mxu0
          %v685 = vadd.f32 0.0, %v684
          %686 = vmatprep.mubr.f32.mxu0 0.0
          %687 = vmatmul.mubr.f32.gmra.mxu0 %v467
          %v688 = vpop.f32.mrf.mxu0
          %v689 = vadd.f32 0.0, %v688
          %v690 = vpop.f32.mrf.mxu0
          %v691 = vadd.f32 0.0, %v690
          %692 = vmatprep.mubr.f32.mxu0 0.0
          %693 = vmatmul.mubr.f32.gmra.mxu0 %v470
          %v694 = vpop.f32.mrf.mxu0
          %v695 = vadd.f32 0.0, %v694
          %v696 = vpop.f32.mrf.mxu0
          %v697 = vadd.f32 0.0, %v696
          %698 = vmatprep.mubr.f32.mxu0 0.0
          %699 = vmatmul.mubr.f32.gmra.mxu0 %v473
          %v700 = vpop.f32.mrf.mxu0
          %v701 = vadd.f32 0.0, %v700
          %v702 = vpop.f32.mrf.mxu0
          %v703 = vadd.f32 0.0, %v702
          %704 = vmatprep.mubr.f32.mxu0 0.0
          %705 = vmatmul.mubr.f32.gmra.mxu0 %v476
          %v706 = vpop.f32.mrf.mxu0
          %v707 = vadd.f32 0.0, %v706
          %v708 = vpop.f32.mrf.mxu0
          %v709 = vadd.f32 0.0, %v708
          %710 = vmatprep.mubr.f32.mxu0 0.0
          %711 = vmatmul.mubr.f32.gmra.mxu0 %v479
          %v712 = vpop.f32.mrf.mxu0
          %v713 = vadd.f32 0.0, %v712
          %v714 = vpop.f32.mrf.mxu0
          %v715 = vadd.f32 0.0, %v714
          %716 = vmatprep.mubr.f32.mxu0 0.0
          %717 = vmatmul.mubr.f32.gmra.mxu0 %v482
          %v718 = vpop.f32.mrf.mxu0
          %v719 = vadd.f32 0.0, %v718
          %v720 = vpop.f32.mrf.mxu0
          %v721 = vadd.f32 0.0, %v720
          %722 = vmatprep.mubr.f32.mxu0 0.0
          %723 = vmatmul.mubr.f32.gmra.mxu0 %v485
          %v724 = vpop.f32.mrf.mxu0
          %v725 = vadd.f32 0.0, %v724
          %v726 = vpop.f32.mrf.mxu0
          %v727 = vadd.f32 0.0, %v726
          %728 = vmatprep.mubr.f32.mxu0 0.0
          %729 = vmatmul.mubr.f32.gmra.mxu0 %v488
          %v730 = vpop.f32.mrf.mxu0
          %v731 = vadd.f32 0.0, %v730
          %v732 = vpop.f32.mrf.mxu0
          %v733 = vadd.f32 0.0, %v732
          %734 = vmatprep.mubr.f32.mxu0 0.0
          %735 = vmatmul.mubr.f32.gmra.mxu0 %v491
          %v736 = vpop.f32.mrf.mxu0
          %v737 = vadd.f32 0.0, %v736
          %v738 = vpop.f32.mrf.mxu0
          %v739 = vadd.f32 0.0, %v738
          %740 = vmatprep.mubr.f32.mxu0 0.0
          %741 = vmatmul.mubr.f32.gmra.mxu0 %v494
          %v742 = vpop.f32.mrf.mxu0
          %v743 = vadd.f32 0.0, %v742
          %v744 = vpop.f32.mrf.mxu0
          %v745 = vadd.f32 0.0, %v744
          %746 = vmatprep.mubr.f32.mxu0 0.0
          %747 = vmatmul.mubr.f32.gmra.mxu0 %v497
          %v748 = vpop.f32.mrf.mxu0
          %v749 = vadd.f32 0.0, %v748
          %v750 = vpop.f32.mrf.mxu0
          %v751 = vadd.f32 0.0, %v750
          %752 = vmatprep.mubr.f32.mxu0 0.0
          %753 = vmatmul.mubr.f32.gmra.mxu0 %v500
          %v754 = vpop.f32.mrf.mxu0
          %v755 = vadd.f32 0.0, %v754
          %v756 = vpop.f32.mrf.mxu0
          %v757 = vadd.f32 0.0, %v756
          %758 = vmatprep.mubr.f32.mxu0 0.0
          %759 = vmatmul.mubr.f32.gmra.mxu0 %v503
          %v760 = vpop.f32.mrf.mxu0
          %v761 = vadd.f32 0.0, %v760
          %v762 = vpop.f32.mrf.mxu0
          %v763 = vadd.f32 0.0, %v762
          %764 = vmatprep.mubr.f32.mxu0 0.0
          %765 = vmatmul.mubr.f32.gmra.mxu0 %v506
          %v766 = vpop.f32.mrf.mxu0
          %v767 = vadd.f32 0.0, %v766
          %v768 = vpop.f32.mrf.mxu0
          %v769 = vadd.f32 0.0, %v768
          %770 = vmatprep.mubr.f32.mxu0 0.0
          %771 = vmatmul.mubr.f32.gmra.mxu0 %v509
          %v772 = vpop.f32.mrf.mxu0
          %v773 = vadd.f32 0.0, %v772
          %v774 = vpop.f32.mrf.mxu0
          %v775 = vadd.f32 0.0, %v774
          %776 = vmatprep.mubr.f32.mxu0 0.0
          %777 = vmatmul.mubr.f32.gmra.mxu0 %v512
          %v778 = vpop.f32.mrf.mxu0
          %v779 = vadd.f32 0.0, %v778
          %v780 = vpop.f32.mrf.mxu0
          %v781 = vadd.f32 0.0, %v780
          %782 = vmatprep.mubr.f32.mxu0 0.0
          %783 = vmatmul.mubr.f32.gmra.mxu0 %v515
          %v784 = vpop.f32.mrf.mxu0
          %v785 = vadd.f32 0.0, %v784
          %v786 = vpop.f32.mrf.mxu0
          %v787 = vadd.f32 0.0, %v786
          %788 = vmatprep.mubr.f32.mxu0 0.0
          %789 = vmatmul.mubr.f32.gmra.mxu0 %v518
          %v790 = vpop.f32.mrf.mxu0
          %v791 = vadd.f32 0.0, %v790
          %v792 = vpop.f32.mrf.mxu0
          %v793 = vadd.f32 0.0, %v792
          %794 = vmatprep.mubr.f32.mxu0 0.0
          %795 = vmatmul.mubr.f32.gmra.mxu0 %v521
          %v796 = vpop.f32.mrf.mxu0
          %v797 = vadd.f32 0.0, %v796
          %v798 = vpop.f32.mrf.mxu0
          %v799 = vadd.f32 0.0, %v798
          %800 = vmatprep.mubr.f32.mxu0 0.0
          %801 = vmatmul.mubr.f32.gmra.mxu0 %v524
          %v802 = vpop.f32.mrf.mxu0
          %v803 = vadd.f32 0.0, %v802
          %v804 = vpop.f32.mrf.mxu0
          %v805 = vadd.f32 0.0, %v804
          %806 = vmatprep.mubr.f32.mxu0 0.0
          %807 = vmatmul.mubr.f32.gmra.mxu0 %v527
          %v808 = vpop.f32.mrf.mxu0
          %v809 = vadd.f32 0.0, %v808
          %v810 = vpop.f32.mrf.mxu0
          %v811 = vadd.f32 0.0, %v810
          %812 = vmatprep.mubr.f32.mxu0 0.0
          %813 = vmatmul.mubr.f32.gmra.mxu0 %v530
          %v814 = vpop.f32.mrf.mxu0
          %v815 = vadd.f32 0.0, %v814
          %v816 = vpop.f32.mrf.mxu0
          %v817 = vadd.f32 0.0, %v816
          %818 = vmatprep.mubr.f32.mxu0 0.0
          %819 = vmatmul.mubr.f32.gmra.mxu0 %v533
          %v820 = vpop.f32.mrf.mxu0
          %v821 = vadd.f32 0.0, %v820
          %v822 = vpop.f32.mrf.mxu0
          %v823 = vadd.f32 0.0, %v822
          %824 = vmatprep.mubr.f32.mxu0 0.0
          %825 = vmatmul.mubr.f32.gmra.mxu0 %v536
          %v826 = vpop.f32.mrf.mxu0
          %v827 = vadd.f32 0.0, %v826
          %v828 = vpop.f32.mrf.mxu0
          %v829 = vadd.f32 0.0, %v828
          %830 = vdwg.mxu0
          %831 = vmatprep.subr.mxu0 0.0
          %832 = vmatpush1.msra.mxu0 0.0
          %833 = vmatprep.subr.mxu0 0.0
          %834 = vmatpush1.msra.mxu0 0.0
          %835 = vmatprep.subr.mxu0 0.0
          %836 = vmatpush1.msra.mxu0 0.0
          %837 = vmatprep.subr.mxu0 0.0
          %838 = vmatpush1.msra.mxu0 0.0
          %839 = vmatprep.subr.mxu0 0.0
          %840 = vmatpush1.msra.mxu0 0.0
          %841 = vmatprep.subr.mxu0 0.0
          %842 = vmatpush1.msra.mxu0 0.0
          %843 = vmatprep.subr.mxu0 0.0
          %844 = vmatpush1.msra.mxu0 0.0
          %845 = vmatprep.subr.mxu0 0.0
          %846 = vmatpush1.msra.mxu0 0.0
          %847 = vmatprep.subr.mxu0 0.0
          %848 = vmatpush1.msra.mxu0 0.0
          %849 = vmatprep.subr.mxu0 0.0
          %850 = vmatpush1.msra.mxu0 0.0
          %851 = vmatprep.subr.mxu0 0.0
          %852 = vmatpush1.msra.mxu0 0.0
          %853 = vmatprep.subr.mxu0 0.0
          %854 = vmatpush1.msra.mxu0 0.0
          %855 = vmatprep.subr.mxu0 0.0
          %856 = vmatpush1.msra.mxu0 0.0
          %857 = vmatprep.subr.mxu0 0.0
          %858 = vmatpush1.msra.mxu0 0.0
          %859 = vmatprep.subr.mxu0 0.0
          %860 = vmatpush1.msra.mxu0 %v421
          %861 = vmatprep.subr.mxu0 0.0
          %862 = vmatpush1.msra.mxu0 %v416
          %863 = vmatprep.subr.mxu0 0.0
          %864 = vmatpush2.msra.mxu0 0.0
          %865 = vmatprep.subr.mxu0 0.0
          %866 = vmatpush2.msra.mxu0 0.0
          %867 = vmatprep.subr.mxu0 0.0
          %868 = vmatpush2.msra.mxu0 0.0
          %869 = vmatprep.subr.mxu0 0.0
          %870 = vmatpush2.msra.mxu0 0.0
          %871 = vmatprep.subr.mxu0 0.0
          %872 = vmatpush2.msra.mxu0 0.0
          %873 = vmatprep.subr.mxu0 0.0
          %874 = vmatpush2.msra.mxu0 0.0
          %875 = vmatprep.subr.mxu0 0.0
          %876 = vmatpush2.msra.mxu0 0.0
          %877 = vmatprep.subr.mxu0 0.0
          %878 = vmatpush2.msra.mxu0 0.0
          %879 = vmatprep.subr.mxu0 0.0
          %880 = vmatpush2.msra.mxu0 0.0
          %881 = vmatprep.subr.mxu0 0.0
          %882 = vmatpush2.msra.mxu0 0.0
          %883 = vmatprep.subr.mxu0 0.0
          %884 = vmatpush2.msra.mxu0 0.0
          %885 = vmatprep.subr.mxu0 0.0
          %886 = vmatpush2.msra.mxu0 0.0
          %887 = vmatprep.subr.mxu0 0.0
          %888 = vmatpush2.msra.mxu0 0.0
          %889 = vmatprep.subr.mxu0 0.0
          %890 = vmatpush2.msra.mxu0 0.0
          %891 = vmatprep.subr.mxu0 0.0
          %892 = vmatpush2.msra.mxu0 0.0
          %893 = vmatprep.subr.mxu0 0.0
          %894 = vmatpush2.msra.mxu0 0.0
          %895 = vmatprep.mubr.f32.mxu0 0.0
          %896 = vmatmul.mubr.f32.gmra.mxu0 %v425
          %v897 = vpop.f32.mrf.mxu0
          %v898 = vadd.f32 0.0, %v897
          %v899 = vpop.f32.mrf.mxu0
          %900 = vmatprep.mubr.f32.mxu0 0.0
          %901 = vmatmul.mubr.f32.gmra.mxu0 %v428
          %v902 = vpop.f32.mrf.mxu0
          %v903 = vadd.f32 0.0, %v902
          %v904 = vpop.f32.mrf.mxu0
          %905 = vmatprep.mubr.f32.mxu0 0.0
          %906 = vmatmul.mubr.f32.gmra.mxu0 %v431
          %v907 = vpop.f32.mrf.mxu0
          %v908 = vadd.f32 0.0, %v907
          %v909 = vpop.f32.mrf.mxu0
          %910 = vmatprep.mubr.f32.mxu0 0.0
          %911 = vmatmul.mubr.f32.gmra.mxu0 %v434
          %v912 = vpop.f32.mrf.mxu0
          %v913 = vadd.f32 0.0, %v912
          %v914 = vpop.f32.mrf.mxu0
          %915 = vmatprep.mubr.f32.mxu0 0.0
          %916 = vmatmul.mubr.f32.gmra.mxu0 %v437
          %v917 = vpop.f32.mrf.mxu0
          %v918 = vadd.f32 0.0, %v917
          %v919 = vpop.f32.mrf.mxu0
          %920 = vmatprep.mubr.f32.mxu0 0.0
          %921 = vmatmul.mubr.f32.gmra.mxu0 %v440
          %v922 = vpop.f32.mrf.mxu0
          %v923 = vadd.f32 0.0, %v922
          %v924 = vpop.f32.mrf.mxu0
          %925 = vmatprep.mubr.f32.mxu0 0.0
          %926 = vmatmul.mubr.f32.gmra.mxu0 %v443
          %v927 = vpop.f32.mrf.mxu0
          %v928 = vadd.f32 0.0, %v927
          %v929 = vpop.f32.mrf.mxu0
          %930 = vmatprep.mubr.f32.mxu0 0.0
          %931 = vmatmul.mubr.f32.gmra.mxu0 %v446
          %v932 = vpop.f32.mrf.mxu0
          %v933 = vadd.f32 0.0, %v932
          %v934 = vpop.f32.mrf.mxu0
          %935 = vmatprep.mubr.f32.mxu0 0.0
          %936 = vmatmul.mubr.f32.gmra.mxu0 %v449
          %v937 = vpop.f32.mrf.mxu0
          %v938 = vadd.f32 0.0, %v937
          %v939 = vpop.f32.mrf.mxu0
          %940 = vmatprep.mubr.f32.mxu0 0.0
          %941 = vmatmul.mubr.f32.gmra.mxu0 %v452
          %v942 = vpop.f32.mrf.mxu0
          %v943 = vadd.f32 0.0, %v942
          %v944 = vpop.f32.mrf.mxu0
          %945 = vmatprep.mubr.f32.mxu0 0.0
          %946 = vmatmul.mubr.f32.gmra.mxu0 %v455
          %v947 = vpop.f32.mrf.mxu0
          %v948 = vadd.f32 0.0, %v947
          %v949 = vpop.f32.mrf.mxu0
          %950 = vmatprep.mubr.f32.mxu0 0.0
          %951 = vmatmul.mubr.f32.gmra.mxu0 %v458
          %v952 = vpop.f32.mrf.mxu0
          %v953 = vadd.f32 0.0, %v952
          %v954 = vpop.f32.mrf.mxu0
          %955 = vmatprep.mubr.f32.mxu0 0.0
          %956 = vmatmul.mubr.f32.gmra.mxu0 %v461
          %v957 = vpop.f32.mrf.mxu0
          %v958 = vadd.f32 0.0, %v957
          %v959 = vpop.f32.mrf.mxu0
          %960 = vmatprep.mubr.f32.mxu0 0.0
          %961 = vmatmul.mubr.f32.gmra.mxu0 %v464
          %v962 = vpop.f32.mrf.mxu0
          %v963 = vadd.f32 0.0, %v962
          %v964 = vpop.f32.mrf.mxu0
          %965 = vmatprep.mubr.f32.mxu0 0.0
          %966 = vmatmul.mubr.f32.gmra.mxu0 %v467
          %v967 = vpop.f32.mrf.mxu0
          %v968 = vadd.f32 0.0, %v967
          %v969 = vpop.f32.mrf.mxu0
          %970 = vmatprep.mubr.f32.mxu0 0.0
          %971 = vmatmul.mubr.f32.gmra.mxu0 %v470
          %v972 = vpop.f32.mrf.mxu0
          %v973 = vadd.f32 0.0, %v972
          %v974 = vpop.f32.mrf.mxu0
          %975 = vmatprep.mubr.f32.mxu0 0.0
          %976 = vmatmul.mubr.f32.gmra.mxu0 %v473
          %v977 = vpop.f32.mrf.mxu0
          %v978 = vadd.f32 0.0, %v977
          %v979 = vpop.f32.mrf.mxu0
          %980 = vmatprep.mubr.f32.mxu0 0.0
          %981 = vmatmul.mubr.f32.gmra.mxu0 %v476
          %v982 = vpop.f32.mrf.mxu0
          %v983 = vadd.f32 0.0, %v982
          %v984 = vpop.f32.mrf.mxu0
          %985 = vmatprep.mubr.f32.mxu0 0.0
          %986 = vmatmul.mubr.f32.gmra.mxu0 %v479
          %v987 = vpop.f32.mrf.mxu0
          %v988 = vadd.f32 0.0, %v987
          %v989 = vpop.f32.mrf.mxu0
          %990 = vmatprep.mubr.f32.mxu0 0.0
          %991 = vmatmul.mubr.f32.gmra.mxu0 %v482
          %v992 = vpop.f32.mrf.mxu0
          %v993 = vadd.f32 0.0, %v992
          %v994 = vpop.f32.mrf.mxu0
          %995 = vmatprep.mubr.f32.mxu0 0.0
          %996 = vmatmul.mubr.f32.gmra.mxu0 %v485
          %v997 = vpop.f32.mrf.mxu0
          %v998 = vadd.f32 0.0, %v997
          %v999 = vpop.f32.mrf.mxu0
          %1000 = vmatprep.mubr.f32.mxu0 0.0
          %1001 = vmatmul.mubr.f32.gmra.mxu0 %v488
          %v1002 = vpop.f32.mrf.mxu0
          %v1003 = vadd.f32 0.0, %v1002
          %v1004 = vpop.f32.mrf.mxu0
          %1005 = vmatprep.mubr.f32.mxu0 0.0
          %1006 = vmatmul.mubr.f32.gmra.mxu0 %v491
          %v1007 = vpop.f32.mrf.mxu0
          %v1008 = vadd.f32 0.0, %v1007
          %v1009 = vpop.f32.mrf.mxu0
          %1010 = vmatprep.mubr.f32.mxu0 0.0
          %1011 = vmatmul.mubr.f32.gmra.mxu0 %v494
          %v1012 = vpop.f32.mrf.mxu0
          %v1013 = vadd.f32 0.0, %v1012
          %v1014 = vpop.f32.mrf.mxu0
          %1015 = vmatprep.mubr.f32.mxu0 0.0
          %1016 = vmatmul.mubr.f32.gmra.mxu0 %v497
          %v1017 = vpop.f32.mrf.mxu0
          %v1018 = vadd.f32 0.0, %v1017
          %v1019 = vpop.f32.mrf.mxu0
          %1020 = vmatprep.mubr.f32.mxu0 0.0
          %1021 = vmatmul.mubr.f32.gmra.mxu0 %v500
          %v1022 = vpop.f32.mrf.mxu0
          %v1023 = vadd.f32 0.0, %v1022
          %v1024 = vpop.f32.mrf.mxu0
          %1025 = vmatprep.mubr.f32.mxu0 0.0
          %1026 = vmatmul.mubr.f32.gmra.mxu0 %v503
          %v1027 = vpop.f32.mrf.mxu0
          %v1028 = vadd.f32 0.0, %v1027
          %v1029 = vpop.f32.mrf.mxu0
          %1030 = vmatprep.mubr.f32.mxu0 0.0
          %1031 = vmatmul.mubr.f32.gmra.mxu0 %v506
          %v1032 = vpop.f32.mrf.mxu0
          %v1033 = vadd.f32 0.0, %v1032
          %v1034 = vpop.f32.mrf.mxu0
          %1035 = vmatprep.mubr.f32.mxu0 0.0
          %1036 = vmatmul.mubr.f32.gmra.mxu0 %v509
          %v1037 = vpop.f32.mrf.mxu0
          %v1038 = vadd.f32 0.0, %v1037
          %v1039 = vpop.f32.mrf.mxu0
          %1040 = vmatprep.mubr.f32.mxu0 0.0
          %1041 = vmatmul.mubr.f32.gmra.mxu0 %v512
          %v1042 = vpop.f32.mrf.mxu0
          %v1043 = vadd.f32 0.0, %v1042
          %v1044 = vpop.f32.mrf.mxu0
          %1045 = vmatprep.mubr.f32.mxu0 0.0
          %1046 = vmatmul.mubr.f32.gmra.mxu0 %v515
          %v1047 = vpop.f32.mrf.mxu0
          %v1048 = vadd.f32 0.0, %v1047
          %v1049 = vpop.f32.mrf.mxu0
          %1050 = vmatprep.mubr.f32.mxu0 0.0
          %1051 = vmatmul.mubr.f32.gmra.mxu0 %v518
          %v1052 = vpop.f32.mrf.mxu0
          %v1053 = vadd.f32 0.0, %v1052
          %v1054 = vpop.f32.mrf.mxu0
          %1055 = vmatprep.mubr.f32.mxu0 0.0
          %1056 = vmatmul.mubr.f32.gmra.mxu0 %v521
          %v1057 = vpop.f32.mrf.mxu0
          %v1058 = vadd.f32 0.0, %v1057
          %v1059 = vpop.f32.mrf.mxu0
          %1060 = vmatprep.mubr.f32.mxu0 0.0
          %1061 = vmatmul.mubr.f32.gmra.mxu0 %v524
          %v1062 = vpop.f32.mrf.mxu0
          %v1063 = vadd.f32 0.0, %v1062
          %v1064 = vpop.f32.mrf.mxu0
          %1065 = vmatprep.mubr.f32.mxu0 0.0
          %1066 = vmatmul.mubr.f32.gmra.mxu0 %v527
          %v1067 = vpop.f32.mrf.mxu0
          %v1068 = vadd.f32 0.0, %v1067
          %v1069 = vpop.f32.mrf.mxu0
          %1070 = vmatprep.mubr.f32.mxu0 0.0
          %1071 = vmatmul.mubr.f32.gmra.mxu0 %v530
          %v1072 = vpop.f32.mrf.mxu0
          %v1073 = vadd.f32 0.0, %v1072
          %v1074 = vpop.f32.mrf.mxu0
          %1075 = vmatprep.mubr.f32.mxu0 0.0
          %1076 = vmatmul.mubr.f32.gmra.mxu0 %v533
          %v1077 = vpop.f32.mrf.mxu0
          %v1078 = vadd.f32 0.0, %v1077
          %v1079 = vpop.f32.mrf.mxu0
          %1080 = vmatprep.mubr.f32.mxu0 0.0
          %1081 = vmatmul.mubr.f32.gmra.mxu0 %v536
          %v1082 = vpop.f32.mrf.mxu0
          %v1083 = vadd.f32 0.0, %v1082
          %v1084 = vpop.f32.mrf.mxu0
          %1085 = vdwg.mxu0
          %s1086 = smul.u32 %s256, 114
          %s1087 = smul.addr %s1086, 8
          %s1088 = scalar_lea.vmem %s209, %s1087
          %1089 = vst [vmem:[%s1088] sm:$0xff] %v605
          %1090 = vst [vmem:[%s1088 + $0x8] sm:$0xff] %v607
          %vm1091 = vcmask 351232
          %1092 = vst.msk [vmem:[%s1088 + $0x10] sm:$0xff] %vm1091, %v898
          %1093 = vst [vmem:[%s1088 + $0x18] sm:$0xff] %v611
          %1094 = vst [vmem:[%s1088 + $0x20] sm:$0xff] %v613
          %1095 = vst.msk [vmem:[%s1088 + $0x28] sm:$0xff] %vm1091, %v903
          %1096 = vst [vmem:[%s1088 + $0x30] sm:$0xff] %v617
          %1097 = vst [vmem:[%s1088 + $0x38] sm:$0xff] %v619
          %1098 = vst.msk [vmem:[%s1088 + $0x40] sm:$0xff] %vm1091, %v908
          %1099 = vst [vmem:[%s1088 + $0x48] sm:$0xff] %v623
          %1100 = vst [vmem:[%s1088 + $0x50] sm:$0xff] %v625
          %1101 = vst.msk [vmem:[%s1088 + $0x58] sm:$0xff] %vm1091, %v913
          %1102 = vst [vmem:[%s1088 + $0x60] sm:$0xff] %v629
          %1103 = vst [vmem:[%s1088 + $0x68] sm:$0xff] %v631
          %1104 = vst.msk [vmem:[%s1088 + $0x70] sm:$0xff] %vm1091, %v918
          %1105 = vst [vmem:[%s1088 + $0x78] sm:$0xff] %v635
          %1106 = vst [vmem:[%s1088 + $0x80] sm:$0xff] %v637
          %1107 = vst.msk [vmem:[%s1088 + $0x88] sm:$0xff] %vm1091, %v923
          %1108 = vst [vmem:[%s1088 + $0x90] sm:$0xff] %v641
          %1109 = vst [vmem:[%s1088 + $0x98] sm:$0xff] %v643
          %1110 = vst.msk [vmem:[%s1088 + $0xa0] sm:$0xff] %vm1091, %v928
          %1111 = vst [vmem:[%s1088 + $0xa8] sm:$0xff] %v647
          %1112 = vst [vmem:[%s1088 + $0xb0] sm:$0xff] %v649
          %1113 = vst.msk [vmem:[%s1088 + $0xb8] sm:$0xff] %vm1091, %v933
          %1114 = vst [vmem:[%s1088 + $0xc0] sm:$0xff] %v653
          %1115 = vst [vmem:[%s1088 + $0xc8] sm:$0xff] %v655
          %1116 = vst.msk [vmem:[%s1088 + $0xd0] sm:$0xff] %vm1091, %v938
          %1117 = vst [vmem:[%s1088 + $0xd8] sm:$0xff] %v659
          %1118 = vst [vmem:[%s1088 + $0xe0] sm:$0xff] %v661
          %1119 = vst.msk [vmem:[%s1088 + $0xe8] sm:$0xff] %vm1091, %v943
          %1120 = vst [vmem:[%s1088 + $0xf0] sm:$0xff] %v665
          %1121 = vst [vmem:[%s1088 + $0xf8] sm:$0xff] %v667
          %1122 = vst.msk [vmem:[%s1088 + $0x100] sm:$0xff] %vm1091, %v948
          %1123 = vst [vmem:[%s1088 + $0x108] sm:$0xff] %v671
          %1124 = vst [vmem:[%s1088 + $0x110] sm:$0xff] %v673
          %1125 = vst.msk [vmem:[%s1088 + $0x118] sm:$0xff] %vm1091, %v953
          %1126 = vst [vmem:[%s1088 + $0x120] sm:$0xff] %v677
          %1127 = vst [vmem:[%s1088 + $0x128] sm:$0xff] %v679
          %1128 = vst.msk [vmem:[%s1088 + $0x130] sm:$0xff] %vm1091, %v958
          %1129 = vst [vmem:[%s1088 + $0x138] sm:$0xff] %v683
          %1130 = vst [vmem:[%s1088 + $0x140] sm:$0xff] %v685
          %1131 = vst.msk [vmem:[%s1088 + $0x148] sm:$0xff] %vm1091, %v963
          %1132 = vst [vmem:[%s1088 + $0x150] sm:$0xff] %v689
          %1133 = vst [vmem:[%s1088 + $0x158] sm:$0xff] %v691
          %1134 = vst.msk [vmem:[%s1088 + $0x160] sm:$0xff] %vm1091, %v968
          %1135 = vst [vmem:[%s1088 + $0x168] sm:$0xff] %v695
          %1136 = vst [vmem:[%s1088 + $0x170] sm:$0xff] %v697
          %1137 = vst.msk [vmem:[%s1088 + $0x178] sm:$0xff] %vm1091, %v973
          %1138 = vst [vmem:[%s1088 + $0x180] sm:$0xff] %v701
          %1139 = vst [vmem:[%s1088 + $0x188] sm:$0xff] %v703
          %1140 = vst.msk [vmem:[%s1088 + $0x190] sm:$0xff] %vm1091, %v978
          %1141 = vst [vmem:[%s1088 + $0x198] sm:$0xff] %v707
          %1142 = vst [vmem:[%s1088 + $0x1a0] sm:$0xff] %v709
          %1143 = vst.msk [vmem:[%s1088 + $0x1a8] sm:$0xff] %vm1091, %v983
          %1144 = vst [vmem:[%s1088 + $0x1b0] sm:$0xff] %v713
          %1145 = vst [vmem:[%s1088 + $0x1b8] sm:$0xff] %v715
          %1146 = vst.msk [vmem:[%s1088 + $0x1c0] sm:$0xff] %vm1091, %v988
          %1147 = vst [vmem:[%s1088 + $0x1c8] sm:$0xff] %v719
          %1148 = vst [vmem:[%s1088 + $0x1d0] sm:$0xff] %v721
          %1149 = vst.msk [vmem:[%s1088 + $0x1d8] sm:$0xff] %vm1091, %v993
          %1150 = vst [vmem:[%s1088 + $0x1e0] sm:$0xff] %v725
          %1151 = vst [vmem:[%s1088 + $0x1e8] sm:$0xff] %v727
          %1152 = vst.msk [vmem:[%s1088 + $0x1f0] sm:$0xff] %vm1091, %v998
          %1153 = vst [vmem:[%s1088 + $0x1f8] sm:$0xff] %v731
          %1154 = vst [vmem:[%s1088 + $0x200] sm:$0xff] %v733
          %1155 = vst.msk [vmem:[%s1088 + $0x208] sm:$0xff] %vm1091, %v1003
          %1156 = vst [vmem:[%s1088 + $0x210] sm:$0xff] %v737
          %1157 = vst [vmem:[%s1088 + $0x218] sm:$0xff] %v739
          %1158 = vst.msk [vmem:[%s1088 + $0x220] sm:$0xff] %vm1091, %v1008
          %1159 = vst [vmem:[%s1088 + $0x228] sm:$0xff] %v743
          %1160 = vst [vmem:[%s1088 + $0x230] sm:$0xff] %v745
          %1161 = vst.msk [vmem:[%s1088 + $0x238] sm:$0xff] %vm1091, %v1013
          %1162 = vst [vmem:[%s1088 + $0x240] sm:$0xff] %v749
          %1163 = vst [vmem:[%s1088 + $0x248] sm:$0xff] %v751
          %1164 = vst.msk [vmem:[%s1088 + $0x250] sm:$0xff] %vm1091, %v1018
          %1165 = vst [vmem:[%s1088 + $0x258] sm:$0xff] %v755
          %1166 = vst [vmem:[%s1088 + $0x260] sm:$0xff] %v757
          %1167 = vst.msk [vmem:[%s1088 + $0x268] sm:$0xff] %vm1091, %v1023
          %1168 = vst [vmem:[%s1088 + $0x270] sm:$0xff] %v761
          %1169 = vst [vmem:[%s1088 + $0x278] sm:$0xff] %v763
          %1170 = vst.msk [vmem:[%s1088 + $0x280] sm:$0xff] %vm1091, %v1028
          %1171 = vst [vmem:[%s1088 + $0x288] sm:$0xff] %v767
          %1172 = vst [vmem:[%s1088 + $0x290] sm:$0xff] %v769
          %1173 = vst.msk [vmem:[%s1088 + $0x298] sm:$0xff] %vm1091, %v1033
          %1174 = vst [vmem:[%s1088 + $0x2a0] sm:$0xff] %v773
          %1175 = vst [vmem:[%s1088 + $0x2a8] sm:$0xff] %v775
          %1176 = vst.msk [vmem:[%s1088 + $0x2b0] sm:$0xff] %vm1091, %v1038
          %1177 = vst [vmem:[%s1088 + $0x2b8] sm:$0xff] %v779
          %1178 = vst [vmem:[%s1088 + $0x2c0] sm:$0xff] %v781
          %1179 = vst.msk [vmem:[%s1088 + $0x2c8] sm:$0xff] %vm1091, %v1043
          %1180 = vst [vmem:[%s1088 + $0x2d0] sm:$0xff] %v785
          %1181 = vst [vmem:[%s1088 + $0x2d8] sm:$0xff] %v787
          %1182 = vst.msk [vmem:[%s1088 + $0x2e0] sm:$0xff] %vm1091, %v1048
          %1183 = vst [vmem:[%s1088 + $0x2e8] sm:$0xff] %v791
          %1184 = vst [vmem:[%s1088 + $0x2f0] sm:$0xff] %v793
          %1185 = vst.msk [vmem:[%s1088 + $0x2f8] sm:$0xff] %vm1091, %v1053
          %1186 = vst [vmem:[%s1088 + $0x300] sm:$0xff] %v797
          %1187 = vst [vmem:[%s1088 + $0x308] sm:$0xff] %v799
          %1188 = vst.msk [vmem:[%s1088 + $0x310] sm:$0xff] %vm1091, %v1058
          %1189 = vst [vmem:[%s1088 + $0x318] sm:$0xff] %v803
          %1190 = vst [vmem:[%s1088 + $0x320] sm:$0xff] %v805
          %1191 = vst.msk [vmem:[%s1088 + $0x328] sm:$0xff] %vm1091, %v1063
          %1192 = vst [vmem:[%s1088 + $0x330] sm:$0xff] %v809
          %1193 = vst [vmem:[%s1088 + $0x338] sm:$0xff] %v811
          %1194 = vst.msk [vmem:[%s1088 + $0x340] sm:$0xff] %vm1091, %v1068
          %1195 = vst [vmem:[%s1088 + $0x348] sm:$0xff] %v815
          %1196 = vst [vmem:[%s1088 + $0x350] sm:$0xff] %v817
          %1197 = vst.msk [vmem:[%s1088 + $0x358] sm:$0xff] %vm1091, %v1073
          %1198 = vst [vmem:[%s1088 + $0x360] sm:$0xff] %v821
          %1199 = vst [vmem:[%s1088 + $0x368] sm:$0xff] %v823
          %1200 = vst.msk [vmem:[%s1088 + $0x370] sm:$0xff] %vm1091, %v1078
          %1201 = vst [vmem:[%s1088 + $0x378] sm:$0x7] %v827
          %1202 = vst [vmem:[%s1088 + $0x380] sm:$0x7] %v829
          %vm1203 = vcmask 346112
          %1204 = vst.msk [vmem:[%s1088 + $0x388] sm:$0x7] %vm1203, %v1083
        $region45: #{tpu_custom_call.1} parent=31 // loop_footer
          %s260 = sadd.s32 1, %s256
        $region46: #{tpu_custom_call.1} parent=31 // loop_footer_branch
          %255 = sbr.rel target = $region42
        $region47: #{tpu_custom_call.1} parent=31 // loop_exit
          _
        %s1205 = smul.u32 4, %s18
        %p1206 = scmp.lt.s32.totalorder %s1205, 7
        %s1207 = scalar_select %p1206, %s1205, 7
        %s1208 = smul.addr %s1207, 114
        %s1209 = smul.addr %s1208, 8
        %s1210 = scalar_lea.vmem %s3, %s1209
        // Predicated region
        $region48: #{tpu_custom_call.1} parent=31 // pred_check
          %p1211 = pneg %p104
        $region49: #{tpu_custom_call.1} parent=31 // pred_check_branch
          %1213 = sbr.rel (%p1211) target = $region51
        $region50: #{tpu_custom_call.1} parent=31 // pred_region
          %s1214 = smul.u32 4, %s18
        $region51: #{tpu_custom_call.1} parent=31 // pred_fallthru
          _
      $region32: #{tpu_custom_call.1} parent=5 // pred_fallthru
        _
      %p1215 = scmp.le.s32.totalorder 2, %s13
      // Predicated region
      $region52: #{tpu_custom_call.1} parent=5 // pred_check
        %p1216 = pneg %p1215
      $region53: #{tpu_custom_call.1} parent=5 // pred_check_branch
        %1218 = sbr.rel (%p1216) target = $region55
      $region54: #{tpu_custom_call.1} parent=5 // pred_region
        %s1219 = ssub.s32 %s13, 2
        // Predicated region
        $region56: #{tpu_custom_call.1} parent=54 // pred_check
          %p1220 = pneg %p110
        $region57: #{tpu_custom_call.1} parent=54 // pred_check_branch
          %1222 = sbr.rel (%p1220) target = $region59
        $region58: #{tpu_custom_call.1} parent=54 // pred_region
          %s1223 = smul.u32 4, %s19
          %p1224 = scmp.lt.s32.totalorder %s1223, 7
          %s1225 = scalar_select %p1224, %s1223, 7
          %s1226 = smul.addr %s1225, 114
          %s1227 = smul.addr %s1226, 8
          %s1228 = scalar_lea.vmem %s3, %s1227
        $region59: #{tpu_custom_call.1} parent=54 // pred_fallthru
          _
      $region55: #{tpu_custom_call.1} parent=5 // pred_fallthru
        _
    $region6: #{tpu_custom_call.1} parent=1 // loop_footer
      %s17 = sadd.s32 1, %s13
    $region7: #{tpu_custom_call.1} parent=1 // loop_footer_branch
      %12 = sbr.rel target = $region3
    $region8: #{tpu_custom_call.1} parent=1 // loop_exit
      _
    %1229 = vsyncpa [#allocation3], 1
    %s1230 = scalar_lea.sflag [#allocation3], 1
    %1231 = vsyncpa %s1230, 1
    %1232 = vsyncpa [#allocation5], 1

</llo_original>
